<compile_context>
chip_gen: v5e
topology: v5e:2x2
jax: 0.10.0
libtpu: 0.0.40
codegen_flags: <defaults>
</compile_context>

<pallas_src>
import functools

import jax
import jax.numpy as jnp
import numpy as np
from jax import lax
from jax.experimental import pallas as pl
from jax.experimental.pallas import tpu as pltpu


def _mlp_sigmoid_store(avg, mx, w1t_ref, w2t_ref, o_ref):
    """avg, mx: (Bt, C) f32 pooled vectors -> sigmoid(fc2(relu(fc1(.)))) sum."""
    bt = avg.shape[0]
    stacked = jnp.concatenate([avg, mx], axis=0)              # (2*Bt, C)

    w1t = w1t_ref[...].astype(jnp.float32)                    # (C, Cr)
    w2t = w2t_ref[...].astype(jnp.float32)                    # (Cr, C)

    h = jnp.maximum(
        jnp.dot(stacked, w1t, preferred_element_type=jnp.float32), 0.0)
    y = jnp.dot(h, w2t, preferred_element_type=jnp.float32)   # (2*Bt, C)

    out = jax.nn.sigmoid(y[:bt] + y[bt:])                     # (Bt, C), lane-dense
    o_ref[...] = out.reshape(o_ref.shape).astype(o_ref.dtype)


def _ca_single_pass_kernel(x_ref, w1t_ref, w2t_ref, o_ref, *, hw):
    # x_ref: (Bt, C, hw) — whole spatial extent in one shot; no scratch needed.
    x = x_ref[...]
    avg = jnp.sum(x, axis=-1, dtype=jnp.float32) * (1.0 / hw)     # (Bt, C)
    mx = jnp.max(x, axis=-1).astype(jnp.float32)                  # (Bt, C)
    _mlp_sigmoid_store(avg, mx, w1t_ref, w2t_ref, o_ref)


def _ca_tiled_kernel(x_ref, w1t_ref, w2t_ref, o_ref,
                     sum_acc, max_acc, *, hw, hw_tile):
    # x_ref   : (Bt, C, hw_tile)  spatial tile of Bt batch elements (native dtype)
    # w1t_ref : (C, Cr)           fc1 weight, transposed (resident across grid)
    # w2t_ref : (Cr, C)           fc2 weight, transposed (resident across grid)
    # o_ref   : (Bt, 1, C)        sigmoid(channel attention), lane-dense in C
    # sum_acc : (Bt, C) f32       running spatial sum
    # max_acc : (Bt, C) f32       running spatial max
    hi = pl.program_id(1)
    n_hw = pl.num_programs(1)

    @pl.when(hi == 0)
    def _init():
        sum_acc[...] = jnp.zeros_like(sum_acc)
        max_acc[...] = jnp.full_like(max_acc, -jnp.inf)

    x = x_ref[...]                                            # (Bt, C, hw_tile)

    if hw % hw_tile != 0:
        # Mask the padded lanes of the last (remainder) spatial tile.
        lane = lax.broadcasted_iota(jnp.int32, x.shape, 2)
        valid = (hi * hw_tile + lane) < hw
        x_sum_in = jnp.where(valid, x, jnp.zeros_like(x))
        x_max_in = jnp.where(valid, x, jnp.full_like(x, -jnp.inf))
    else:
        x_sum_in = x
        x_max_in = x

    # Accumulate in f32 (input tile itself stays in its native dtype).
    sum_acc[...] += jnp.sum(x_sum_in, axis=-1, dtype=jnp.float32)
    max_acc[...] = jnp.maximum(max_acc[...],
                               jnp.max(x_max_in, axis=-1).astype(jnp.float32))

    @pl.when(hi == n_hw - 1)
    def _finalize():
        avg = sum_acc[...] * (1.0 / hw)                       # (Bt, C)
        _mlp_sigmoid_store(avg, max_acc[...], w1t_ref, w2t_ref, o_ref)


def _pick_batch_tile(b, max_bt=8):
    for bt in range(min(b, max_bt), 0, -1):
        if b % bt == 0:
            return bt
    return 1


def _pick_hw_tile(hw, c, bt, dtype_bytes, budget_bytes):
    # Bytes per spatial lane of the (double-buffered) input tile.
    per_lane = 2 * bt * c * dtype_bytes
    if hw <= 128 or per_lane * hw <= budget_bytes:
        return hw                                             # single-pass path
    tile = budget_bytes // per_lane
    tile = max(128, (tile // 128) * 128)                      # multiple of 128 lanes
    return min(tile, hw)


def channel_attention(x, w1, w2, *, max_batch_tile=8, hw_budget_bytes=4 << 20):
    """x: (B, C, H, W) NCHW; w1: (C//r, C); w2: (C, C//r). Returns (B, C, 1, 1).

    Works for f32 or bf16 `x` (no full-tile f32 cast inside the kernel)."""
    B, C, H, W = x.shape
    Cr = w1.shape[0]
    hw = H * W

    bt = _pick_batch_tile(B, max_batch_tile)
    hw_tile = _pick_hw_tile(hw, C, bt, x.dtype.itemsize, hw_budget_bytes)

    x_flat = x.reshape(B, C, hw)
    w1t = jnp.transpose(w1)                                   # (C, Cr)
    w2t = jnp.transpose(w2)                                   # (Cr, C)

    cparams = pltpu.CompilerParams(
        dimension_semantics=("parallel",) if hw_tile == hw
        else ("parallel", "arbitrary"),
        vmem_limit_bytes=32 * 1024 * 1024,
    )

    if hw_tile == hw:
        kernel = functools.partial(_ca_single_pass_kernel, hw=hw)
        out = pl.pallas_call(
            kernel,
            out_shape=jax.ShapeDtypeStruct((B, 1, C), x.dtype),
            grid_spec=pltpu.PrefetchScalarGridSpec(
                num_scalar_prefetch=0,
                grid=(B // bt,),
                in_specs=[
                    pl.BlockSpec((bt, C, hw), lambda bi: (bi, 0, 0)),
                    pl.BlockSpec((C, Cr), lambda bi: (0, 0)),
                    pl.BlockSpec((Cr, C), lambda bi: (0, 0)),
                ],
                out_specs=pl.BlockSpec((bt, 1, C), lambda bi: (bi, 0, 0)),
            ),
            compiler_params=cparams,
        )(x_flat, w1t, w2t)
    else:
        n_hw = pl.cdiv(hw, hw_tile)
        kernel = functools.partial(_ca_tiled_kernel, hw=hw, hw_tile=hw_tile)
        out = pl.pallas_call(
            kernel,
            out_shape=jax.ShapeDtypeStruct((B, 1, C), x.dtype),
            grid_spec=pltpu.PrefetchScalarGridSpec(
                num_scalar_prefetch=0,
                grid=(B // bt, n_hw),
                in_specs=[
                    pl.BlockSpec((bt, C, hw_tile), lambda bi, hi: (bi, 0, hi)),
                    pl.BlockSpec((C, Cr), lambda bi, hi: (0, 0)),   # resident
                    pl.BlockSpec((Cr, C), lambda bi, hi: (0, 0)),   # resident
                ],
                out_specs=pl.BlockSpec((bt, 1, C), lambda bi, hi: (bi, 0, 0)),
                scratch_shapes=[
                    pltpu.VMEM((bt, C), jnp.float32),   # running sum
                    pltpu.VMEM((bt, C), jnp.float32),   # running max
                ],
            ),
            compiler_params=cparams,
        )(x_flat, w1t, w2t)

    return out.reshape(B, C, 1, 1)


def channel_attention_ref(x, w1, w2):
    """Pure-JAX reference mirroring the PyTorch module."""
    avg = jnp.mean(x, axis=(2, 3))                            # (B, C)
    mx = jnp.max(x, axis=(2, 3))                              # (B, C)

    def mlp(v):                                               # v: (B, C)
        h = jnp.maximum(
            jnp.dot(v, w1.T, precision=lax.Precision.HIGHEST), 0.0)   # (B, Cr)
        return jnp.dot(h, w2.T, precision=lax.Precision.HIGHEST)      # (B, C)

    out = jax.nn.sigmoid(mlp(avg) + mlp(mx))                  # (B, C)
    return out[:, :, None, None]


if __name__ == "__main__":
    # Small shapes consistent with the module: in_planes=16, ratio=8 -> hidden=2.
    B, C = 2, 16
    ratio = 8
    Cr = C // ratio

    key = jax.random.PRNGKey(0)
    kx, k1, k2 = jax.random.split(key, 3)

    # Deterministic Kaiming-ish init for the two 1x1 conv weights (no bias).
    w1 = jax.random.normal(k1, (Cr, C), dtype=jnp.float32) * (2.0 / C) ** 0.5
    w2 = jax.random.normal(k2, (C, Cr), dtype=jnp.float32) * (2.0 / Cr) ** 0.5

    # 1) single-pass path (whole H*W fits the VMEM budget)
    x = jax.random.normal(kx, (B, C, 16, 16), dtype=jnp.float32)
    out = jax.block_until_ready(channel_attention(x, w1, w2))
    ref = channel_attention_ref(x, w1, w2)
    assert out.shape == (B, C, 1, 1)
    np.testing.assert_allclose(np.asarray(out), np.asarray(ref),
                               rtol=1e-5, atol=1e-5)

    # 2) tiled-reduction path (tiny budget forces hw_tile=128, n_hw=2, no remainder)
    out = jax.block_until_ready(channel_attention(x, w1, w2, hw_budget_bytes=1024))
    np.testing.assert_allclose(np.asarray(out), np.asarray(ref),
                               rtol=1e-5, atol=1e-5)

    # 3) tiled-reduction path with a remainder spatial tile (13*13 = 169 lanes)
    x3 = jax.random.normal(kx, (B, C, 13, 13), dtype=jnp.float32)
    out3 = jax.block_until_ready(channel_attention(x3, w1, w2, hw_budget_bytes=1024))
    ref3 = channel_attention_ref(x3, w1, w2)
    np.testing.assert_allclose(np.asarray(out3), np.asarray(ref3),
                               rtol=1e-5, atol=1e-5)

    # 4) bf16 input (no full-tile f32 cast in the kernel)
    xb = x.astype(jnp.bfloat16)
    outb = jax.block_until_ready(channel_attention(xb, w1, w2))
    refb = channel_attention_ref(xb.astype(jnp.float32), w1, w2)
    np.testing.assert_allclose(np.asarray(outb, dtype=np.float32),
                               np.asarray(refb), rtol=2e-2, atol=2e-2)

    print("KERNEL_OK")
</pallas_src>

<mosaic_0001>
module attributes {stable_mosaic.version = 11 : i64} {
  func.func @_ca_single_pass_kernel(%arg0: i32, %arg1: memref<2x16x256xf32, #tpu.memory_space<vmem>>, %arg2: memref<16x2xf32, #tpu.memory_space<vmem>>, %arg3: memref<2x16xf32, #tpu.memory_space<vmem>>, %arg4: memref<2x1x16xf32, #tpu.memory_space<vmem>>) attributes {dimension_semantics = [#tpu.dimension_semantics<parallel>], iteration_bounds = array<i64: 1>, scalar_prefetch = 0 : i64, scratch_operands = 0 : i64, tpu.core_type = #tpu.core_type<tc>, window_params = [{transform_indices = @transform_0, window_bounds = array<i64: 2, 16, 256>}, {pipeline_mode = #tpu.pipeline_mode<synchronous>, transform_indices = @transform_1, window_bounds = array<i64: 16, 2>}, {pipeline_mode = #tpu.pipeline_mode<synchronous>, transform_indices = @transform_2, window_bounds = array<i64: 2, 16>}, {transform_indices = @transform_3, window_bounds = array<i64: 2, 1, 16>}]} {
    %c0 = arith.constant 0 : index
    %c0_0 = arith.constant 0 : index
    %c0_1 = arith.constant 0 : index
    %0 = vector.load %arg1[%c0, %c0_0, %c0_1] : memref<2x16x256xf32, #tpu.memory_space<vmem>>, vector<2x16x256xf32>
    %cst = arith.constant dense<0.000000e+00> : vector<2x16xf32>
    %1 = vector.multi_reduction <add>, %0, %cst [2] : vector<2x16x256xf32> to vector<2x16xf32>
    %cst_2 = arith.constant 3.906250e-03 : f32
    %2 = vector.broadcast %cst_2 : f32 to vector<2x16xf32>
    %3 = arith.mulf %1, %2 : vector<2x16xf32>
    %cst_3 = arith.constant dense<0xFF800000> : vector<2x16xf32>
    %4 = vector.multi_reduction <maximumf>, %0, %cst_3 [2] : vector<2x16x256xf32> to vector<2x16xf32>
    %5 = tpu.concatenate %3, %4 in 0 : vector<2x16xf32>, vector<2x16xf32> -> vector<4x16xf32>
    %c0_4 = arith.constant 0 : index
    %c0_5 = arith.constant 0 : index
    %6 = vector.load %arg2[%c0_4, %c0_5] : memref<16x2xf32, #tpu.memory_space<vmem>>, vector<16x2xf32>
    %c0_6 = arith.constant 0 : index
    %c0_7 = arith.constant 0 : index
    %7 = vector.load %arg3[%c0_6, %c0_7] : memref<2x16xf32, #tpu.memory_space<vmem>>, vector<2x16xf32>
    %cst_8 = arith.constant dense<0.000000e+00> : vector<4x2xf32>
    %8 = tpu.matmul %5, %6, %cst_8 {dimension_numbers = #tpu.dot_dimension_numbers<[1], [0], [0], [1], [0, 0, 1, 1], [], []>} : vector<4x16xf32>, vector<16x2xf32>, vector<4x2xf32> -> vector<4x2xf32>
    %cst_9 = arith.constant 0.000000e+00 : f32
    %9 = vector.broadcast %cst_9 : f32 to vector<4x2xf32>
    %10 = arith.maximumf %8, %9 : vector<4x2xf32>
    %cst_10 = arith.constant dense<0.000000e+00> : vector<4x16xf32>
    %11 = tpu.matmul %10, %7, %cst_10 {dimension_numbers = #tpu.dot_dimension_numbers<[1], [0], [0], [1], [0, 0, 1, 1], [], []>} : vector<4x2xf32>, vector<2x16xf32>, vector<4x16xf32> -> vector<4x16xf32>
    %12 = vector.extract_strided_slice %11 {offsets = [0, 0], sizes = [2, 16], strides = [1, 1]} : vector<4x16xf32> to vector<2x16xf32>
    %13 = vector.extract_strided_slice %11 {offsets = [2, 0], sizes = [2, 16], strides = [1, 1]} : vector<4x16xf32> to vector<2x16xf32>
    %14 = arith.addf %12, %13 : vector<2x16xf32>
    %15 = arith.negf %14 : vector<2x16xf32>
    %16 = math.exp %15 : vector<2x16xf32>
    %cst_11 = arith.constant 1.000000e+00 : f32
    %17 = vector.broadcast %cst_11 : f32 to vector<2x16xf32>
    %18 = arith.addf %17, %16 : vector<2x16xf32>
    %19 = arith.divf %17, %18 : vector<2x16xf32>
    %20 = vector.shape_cast %19 : vector<2x16xf32> to vector<2x1x16xf32>
    %c0_12 = arith.constant 0 : index
    %c0_13 = arith.constant 0 : index
    %c0_14 = arith.constant 0 : index
    %21 = vector.load %arg4[%c0_12, %c0_13, %c0_14] : memref<2x1x16xf32, #tpu.memory_space<vmem>>, vector<2x1x16xf32>
    tpu.vector_store %arg4[%c0_12, %c0_13, %c0_14], %20 {strides = array<i32>} : memref<2x1x16xf32, #tpu.memory_space<vmem>>, vector<2x1x16xf32>,
    return
  }
  func.func @transform_0(%arg0: i32) -> (i32, i32, i32) {
    %c0_i32 = arith.constant 0 : i32
    %c0_i32_0 = arith.constant 0 : i32
    %c0_i32_1 = arith.constant 0 : i32
    return %arg0, %c0_i32, %c0_i32_0 : i32, i32, i32
  }
  func.func @transform_1(%arg0: i32) -> (i32, i32) {
    %c0_i32 = arith.constant 0 : i32
    %c0_i32_0 = arith.constant 0 : i32
    %c0_i32_1 = arith.constant 0 : i32
    return %c0_i32, %c0_i32_0 : i32, i32
  }
  func.func @transform_2(%arg0: i32) -> (i32, i32) {
    %c0_i32 = arith.constant 0 : i32
    %c0_i32_0 = arith.constant 0 : i32
    %c0_i32_1 = arith.constant 0 : i32
    return %c0_i32, %c0_i32_0 : i32, i32
  }
  func.func @transform_3(%arg0: i32) -> (i32, i32, i32) {
    %c0_i32 = arith.constant 0 : i32
    %c0_i32_0 = arith.constant 0 : i32
    %c0_i32_1 = arith.constant 0 : i32
    return %arg0, %c0_i32, %c0_i32_0 : i32, i32, i32
  }
}

</mosaic_0001>

<llo_original>
// kernel: tpu_custom_call.1
$region0: #{tpu_custom_call.1}
  #allocation0 [shape = 'u32[]', space=smem, size = 0x4, offset = 0x4, fixed_abs, tag = 'smem constant byte address 0x4 - core index']
  #allocation1 [shape = 'u32[72,128]{1,0:T(1,128)}', space=vmem, size = 0x9000, scoped, tag = 'internal scratch']
  %s0 = inlined_call_operand.hbm [shape: f32[2,16,256], index: 0, kind: input, shape index: {}]
  %s1 = inlined_call_operand.vmem [shape: f32[16,2], index: 1, kind: input, shape index: {}]
  %s2 = inlined_call_operand.vmem [shape: f32[2,16], index: 2, kind: input, shape index: {}]
  %s3 = inlined_call_operand.hbm [shape: f32[2,1,16], index: 3, kind: output, shape index: {}]
  %s4 = sld [smem:[#allocation0]]
  $region26: #{tpu_custom_call.1} parent=0
    _
  %s6 = ssub.s32 1, %s4
  %s7 = scalar_select 0, %s6, %s4
  $region1: #{tpu_custom_call.1} parent=0
    #allocation2 [shape = 'u8[32768]{0}', space=vmem, size = 0x8000, scoped, tag = 'input window, operand 0, single buffered']
    #allocation3 [shape = 's32[1]{0}', space=sflag, size = 0x4, scoped, tag = 'scoped memory for tpu_custom_call.1']
    #allocation4 [shape = 's32[1]{0}', space=sflag, size = 0x4, scoped, tag = 'scoped memory for tpu_custom_call.1']
    #allocation5 [shape = 'u8[1024]{0}', space=vmem, size = 0x400, scoped, tag = 'output window, operand 0, single buffered']
    %8 = vsyncpa [#allocation3], 0
    %9 = vsyncpa [#allocation4], 0
    // Predicated region
    $region2: #{tpu_custom_call.1} parent=1 // pred_check
      _
    $region3: #{tpu_custom_call.1} parent=1 // pred_check_branch
      %11 = sbr.rel (0) target = $region5
    $region4: #{tpu_custom_call.1} parent=1 // pred_region
      %13 = vsyncadd [#allocation3], 0
      %s14 = sshll.u32 %s0, 4
      %s15 = int_to_ptr.hbm [resolvable:$true] %s14
      %s16 = sshll.u32 [#allocation2], 4
      %s17 = int_to_ptr.vmem [resolvable:$true] %s16
      %22 = dma.hbm_to_vmem [thread:$0]  %s15, 1024, %s17, [#allocation3], 256, 256, 16
    $region5: #{tpu_custom_call.1} parent=1 // pred_fallthru
      _
    // Predicated region
    $region6: #{tpu_custom_call.1} parent=1 // pred_check
      _
    $region7: #{tpu_custom_call.1} parent=1 // pred_check_branch
      %24 = sbr.rel (0) target = $region9
    $region8: #{tpu_custom_call.1} parent=1 // pred_region
      _
    $region9: #{tpu_custom_call.1} parent=1 // pred_fallthru
      _
    // Predicated region
    $region10: #{tpu_custom_call.1} parent=1 // pred_check
      _
    $region11: #{tpu_custom_call.1} parent=1 // pred_check_branch
      %26 = sbr.rel (0) target = $region13
    $region12: #{tpu_custom_call.1} parent=1 // pred_region
      _
    $region13: #{tpu_custom_call.1} parent=1 // pred_fallthru
      _
    // Predicated region
    $region14: #{tpu_custom_call.1} parent=1 // pred_check
      _
    $region15: #{tpu_custom_call.1} parent=1 // pred_check_branch
      %28 = sbr.rel (0) target = $region17
    $region16: #{tpu_custom_call.1} parent=1 // pred_region
      %30 = dma.done [#allocation3], 1024
    $region17: #{tpu_custom_call.1} parent=1 // pred_fallthru
      _
    %v31 = vld [vmem:[#allocation2] sm:$0xff]
    %v32 = vld [vmem:[#allocation2 + $0x8] sm:$0xff]
    %v33 = vld [vmem:[#allocation2 + $0x10] sm:$0xff]
    %v34 = vld [vmem:[#allocation2 + $0x18] sm:$0xff]
    %v35 = vld [vmem:[#allocation2 + $0x20] sm:$0xff]
    %v36 = vld [vmem:[#allocation2 + $0x28] sm:$0xff]
    %v37 = vld [vmem:[#allocation2 + $0x30] sm:$0xff]
    %v38 = vld [vmem:[#allocation2 + $0x38] sm:$0xff]
    %v39 = vadd.f32 %v31, %v32
    %40 = vadd.xlane.f32.xlu0 %v39
    %v41 = vpop.xlane.xlu0 %40
    %v42 = vadd.f32 %v33, %v34
    %43 = vadd.xlane.f32.xlu0 %v42
    %v44 = vpop.xlane.xlu0 %43
    %v45 = vadd.f32 %v35, %v36
    %46 = vadd.xlane.f32.xlu0 %v45
    %v47 = vpop.xlane.xlu0 %46
    %v48 = vadd.f32 %v37, %v38
    %49 = vadd.xlane.f32.xlu0 %v48
    %v50 = vpop.xlane.xlu0 %49
    %v51 = vmul.f32 %v41, 0.00390625
    %v52 = vmul.f32 %v44, 0.00390625
    %v53 = vmul.f32 %v47, 0.00390625
    %v54 = vmul.f32 %v50, 0.00390625
    %v55 = vmax.f32 %v31, %v32
    %56 = vmax.xlane.f32.xlu0 %v55
    %v57 = vpop.xlane.xlu0 %56
    %v58 = vmax.f32 %v33, %v34
    %59 = vmax.xlane.f32.xlu0 %v58
    %v60 = vpop.xlane.xlu0 %59
    %v61 = vmax.f32 %v35, %v36
    %62 = vmax.xlane.f32.xlu0 %v61
    %v63 = vpop.xlane.xlu0 %62
    %v64 = vmax.f32 %v37, %v38
    %65 = vmax.xlane.f32.xlu0 %v64
    %v66 = vpop.xlane.xlu0 %65
    %v71 = vlaneseq
    %v72 = vand.u32 %v71, 127
    %v73 = vperm.slane %v51, %v72
    %v74 = vadd.s32 %v72, 4294967288
    %v75 = vperm.slane %v52, %v74
    %vm76 = vcmask 130112
    %v77 = vsel %vm76, %v75, %v73
    %v78 = vperm.slane %v53, %v72
    %v79 = vperm.slane %v54, %v74
    %v80 = vsel %vm76, %v79, %v78
    %vm81 = vcmask 1041409
    %v82 = vsel %vm81, %v80, %v77
    %v88 = vperm.slane %v57, %v72
    %v89 = vperm.slane %v60, %v74
    %v90 = vsel %vm76, %v89, %v88
    %v91 = vperm.slane %v63, %v72
    %v92 = vperm.slane %v66, %v74
    %v93 = vsel %vm76, %v92, %v91
    %vm94 = vcmask 1043459
    %v95 = vsel %vm94, %v93, %v90
    %vm97 = vcmask 1041408
    %v98 = vsel %vm97, %v82, %v95
    %v99 = vld [vmem:[%s1] sm:$0xff]
    %v100 = vld [vmem:[%s1 + $0x8] sm:$0xff]
    %v101 = vld [vmem:[%s2] sm:$0x3]
    %vm102 = vcmask 130048
    %v104 = vsel %vm102, %v98, 0
    %106 = vmatpush.msra.mxu0 0.0
    %107 = vmatpush.msra.mxu0 0.0
    %108 = vmatpush.msra.mxu0 0.0
    %109 = vmatpush.msra.mxu0 0.0
    %110 = vmatpush.msra.mxu0 0.0
    %111 = vmatpush.msra.mxu0 0.0
    %112 = vmatpush.msra.mxu0 0.0
    %113 = vmatpush.msra.mxu0 0.0
    %114 = vmatpush.msra.mxu0 0.0
    %115 = vmatpush.msra.mxu0 0.0
    %116 = vmatpush.msra.mxu0 0.0
    %117 = vmatpush.msra.mxu0 0.0
    %118 = vmatpush.msra.mxu0 0.0
    %119 = vmatpush.msra.mxu0 0.0
    %120 = vmatpush.msra.mxu0 %v100
    %121 = vmatpush.msra.mxu0 %v99
    %122 = vmatmul.f32.gmra.mxu0 %v104
    %v123 = vpop.f32.mrf.mxu0
    %v124 = vadd.f32 0.0, %v123
    %125 = vdwg.mxu0
    %v126 = vmax.f32 %v124, 0.0
    %vm127 = vcmask 15360
    %v129 = vsel %vm127, %v126, 0
    %v132 = vsel %vm97, %v101, 0
    %134 = vmatpush.msra.mxu0 0.0
    %135 = vmatpush.msra.mxu0 0.0
    %136 = vmatpush.msra.mxu0 0.0
    %137 = vmatpush.msra.mxu0 0.0
    %138 = vmatpush.msra.mxu0 0.0
    %139 = vmatpush.msra.mxu0 0.0
    %140 = vmatpush.msra.mxu0 0.0
    %141 = vmatpush.msra.mxu0 0.0
    %142 = vmatpush.msra.mxu0 0.0
    %143 = vmatpush.msra.mxu0 0.0
    %144 = vmatpush.msra.mxu0 0.0
    %145 = vmatpush.msra.mxu0 0.0
    %146 = vmatpush.msra.mxu0 0.0
    %147 = vmatpush.msra.mxu0 0.0
    %148 = vmatpush.msra.mxu0 0.0
    %149 = vmatpush.msra.mxu0 %v132
    %150 = vmatmul.f32.gmra.mxu0 %v129
    %v151 = vpop.f32.mrf.mxu0
    %v152 = vadd.f32 0.0, %v151
    %153 = vdwg.mxu0
    %v155 = vrot.slane %v152, 2
    %v157 = vadd.f32 %v152, %v155
    %v158 = vxor.u32 %v157, 2147483648
    %v159 = vmul.f32 %v158, 1.442695
    %v160 = vpow.pop %v159
    %v161 = vadd.f32 %v160, 1.0
    %v162 = vrcp.pop %v161
    %v163 = vmul.f32 %v161, %v162
    %v164 = vsub.f32 1.0, %v163
    %v165 = vmul.f32 %v162, %v164
    %v166 = vadd.f32 %v162, %v165
    %vm167 = vweird.f32 %v161
    %vm168 = vweird.f32 %v162
    %vm169 = vmor %vm167, %vm168
    %v170 = vsel %vm169, %v162, %v166
    %v171 = vand.u32 2147483647, %v161
    %vm172 = vcmp.eq.f32.partialorder %v171, 8.507059e+37
    %v173 = vand.u32 %v161, 2147483648
    %v174 = vor.u32 1.1754944e-38, %v173
    %v175 = vsel %vm172, %v174, %v170
    %v176 = vmul.f32 1.0, %v175
    %v178 = vrot.slane %v176, 1
    %vm180 = vcmask 122880
    %181 = vst.msk [vmem:[#allocation5] sm:$0x1] %vm180, %v176
    %182 = vst.msk [vmem:[#allocation5 + $0x1] sm:$0x1] %vm180, %v178
    // Predicated region
    $region18: #{tpu_custom_call.1} parent=1 // pred_check
      _
    $region19: #{tpu_custom_call.1} parent=1 // pred_check_branch
      %184 = sbr.rel (0) target = $region21
    $region20: #{tpu_custom_call.1} parent=1 // pred_region
      %186 = vsyncadd [#allocation4], 0
      %s187 = sshll.u32 [#allocation5], 4
      %s188 = int_to_ptr.vmem [resolvable:$true] %s187
      %s189 = sshll.u32 %s3, 4
      %s190 = int_to_ptr.hbm [resolvable:$true] %s189
      %195 = dma.vmem_to_hbm [thread:$0]  %s188, 32, %s190, [#allocation4], 16, 16, 1
    $region21: #{tpu_custom_call.1} parent=1 // pred_fallthru
      _
    // Predicated region
    $region22: #{tpu_custom_call.1} parent=1 // pred_check
      _
    $region23: #{tpu_custom_call.1} parent=1 // pred_check_branch
      %197 = sbr.rel (0) target = $region25
    $region24: #{tpu_custom_call.1} parent=1 // pred_region
      %199 = dma.done [#allocation4], 32
    $region25: #{tpu_custom_call.1} parent=1 // pred_fallthru
      _
    %200 = vsyncpa [#allocation3], 1
    %201 = vsyncpa [#allocation4], 1

</llo_original>
